<compile_context>
chip_gen: v7x
topology: tpu7x:2x2x1
jax: 0.10.0
libtpu: 0.0.40
codegen_flags: <defaults>
</compile_context>

<pallas_src>
import functools

import jax
import jax.numpy as jnp
from jax import lax
from jax.experimental import pallas as pl
from jax.experimental.pallas import tpu as pltpu

_LANE = 128
_SUBLANE = 8
_MAX_BATCH_TILE = 2048  # lanes per tile when tiling large batches (>= 512 guidance)


# ----------------------------------------------------------------------------
# Parameter handling
# ----------------------------------------------------------------------------
def init_odefunc_params(key, data_dim, hidden_dim, dtype=jnp.float32):
    """Mirror the PyTorch init: weights ~ Normal(0, 0.1), biases = 0.
    Weights stored (in_features, out_features) == PyTorch weight.T."""
    k1, k2, k3 = jax.random.split(key, 3)
    w1 = 0.1 * jax.random.normal(k1, (data_dim, hidden_dim), dtype)
    w2 = 0.1 * jax.random.normal(k2, (hidden_dim, hidden_dim), dtype)
    w3 = 0.1 * jax.random.normal(k3, (hidden_dim, data_dim), dtype)
    b1 = jnp.zeros((1, hidden_dim), dtype)
    b2 = jnp.zeros((1, hidden_dim), dtype)
    b3 = jnp.zeros((1, data_dim), dtype)
    return (w1, b1, w2, b2, w3, b3)


def fold_odefunc_params(params):
    """Fold the 3 affine layers into one (W, b). Folding is done in f32
    regardless of the parameter dtype (avoids compounding bf16 rounding),
    then cast back. Call ONCE, outside any solver loop."""
    w1, b1, w2, b2, w3, b3 = params
    dtype = w1.dtype
    f32 = jnp.float32
    w = w1.astype(f32) @ w2.astype(f32) @ w3.astype(f32)                      # (D, D)
    b = (b1.astype(f32) @ w2.astype(f32) + b2.astype(f32)) @ w3.astype(f32)   # (1, D)
    b = b + b3.astype(f32)
    return w.astype(dtype), b.reshape(-1).astype(dtype)                       # (D,D),(D,)


def odefunc_forward_ref(t, y, params):
    """Plain-JAX reference matching the PyTorch module (unfused, 3 layers)."""
    del t
    w1, b1, w2, b2, w3, b3 = params
    h = y @ w1 + b1
    h = h @ w2 + b2
    return h @ w3 + b3


# ----------------------------------------------------------------------------
# Kernels (transposed layout: state is (data_dim, batch_tile))
# ----------------------------------------------------------------------------
def _affine_vpu(x, w_ref, b_ref, data_dim):
    """out[j, :] = sum_k W[k, j] * x[k, :] + b[j].

    x: (D, Bt) f32 value; w_ref: (D, D) SMEM (stored (in, out)); b_ref: (D,) SMEM.
    For D<=8 this is D*D scalar-broadcast FMAs on the VPU -- no MXU involved."""
    rows = []
    for j in range(data_dim):          # static unroll (tiny D)
        acc = x[0:1, :] * w_ref[0, j]
        for k in range(1, data_dim):
            acc = acc + x[k:k + 1, :] * w_ref[k, j]
        rows.append(acc + b_ref[j])
    return jnp.concatenate(rows, axis=0)   # (D, Bt) f32


def _affine_fwd_vpu_kernel(w_ref, b_ref, y_ref, o_ref, *, data_dim):
    x = y_ref[...].astype(jnp.float32)
    o_ref[...] = _affine_vpu(x, w_ref, b_ref, data_dim).astype(o_ref.dtype)


def _affine_fwd_mxu_kernel(wT_ref, b_ref, y_ref, o_ref):
    # Non-toy data_dim (>=128): one MXU matmul, W^T resident in VMEM across the grid.
    acc = jnp.dot(wT_ref[...], y_ref[...], preferred_element_type=jnp.float32)
    o_ref[...] = (acc + b_ref[...]).astype(o_ref.dtype)


def _euler_vpu_kernel(w_ref, b_ref, y0_ref, yn_ref, *, data_dim, num_steps, dt):
    """num_steps explicit-Euler updates fused into one kernel invocation:
    W/b stay in SMEM, state is carried as a loop value (registers/VMEM)."""
    y = y0_ref[...].astype(jnp.float32)

    def body(_, y):
        return y + dt * _affine_vpu(y, w_ref, b_ref, data_dim)

    y = lax.fori_loop(0, num_steps, body, y)
    yn_ref[...] = y.astype(yn_ref.dtype)


# ----------------------------------------------------------------------------
# Tiling helpers
# ----------------------------------------------------------------------------
def _pick_batch_tile(batch):
    # Batch sits on the LANE axis.  Single full-array tile for small batches
    # (any size allowed); otherwise a large lane-multiple tile (>=512 guidance).
    if batch <= _MAX_BATCH_TILE:
        return batch
    return _MAX_BATCH_TILE


def _vmem_limit_bytes(data_dim, batch_tile):
    # Budget: double-buffered in + out tiles + f32 working set + headroom.
    d_pad = -(-data_dim // _SUBLANE) * _SUBLANE
    tile_f32 = d_pad * batch_tile * 4
    return int(min(max(8 * tile_f32 + (2 << 20), 4 << 20), 48 << 20))


def _pad_lanes(y_t, batch, batch_tile):
    pad = pl.cdiv(batch, batch_tile) * batch_tile
    if pad != batch:
        y_t = jnp.pad(y_t, ((0, 0), (0, pad - batch)))
    return y_t, pad


# ----------------------------------------------------------------------------
# Public entry points
# ----------------------------------------------------------------------------
def _affine_forward_t(y_t, w, b):
    """Single fused-affine evaluation on transposed state y_t:(D, B)."""
    data_dim, batch = y_t.shape
    batch_tile = _pick_batch_tile(batch)
    y_t, pad = _pad_lanes(y_t, batch, batch_tile)
    grid = (pad // batch_tile,)

    if data_dim <= 8:
        kernel = functools.partial(_affine_fwd_vpu_kernel, data_dim=data_dim)
        in_specs = [
            pl.BlockSpec(memory_space=pltpu.MemorySpace.SMEM),        # W (D,D)
            pl.BlockSpec(memory_space=pltpu.MemorySpace.SMEM),        # b (D,)
            pl.BlockSpec((data_dim, batch_tile), lambda i: (0, i)),   # y_T tile
        ]
        operands = (w, b, y_t)
    else:
        kernel = _affine_fwd_mxu_kernel
        in_specs = [
            pl.BlockSpec((data_dim, data_dim), lambda i: (0, 0)),     # W^T, VMEM-resident
            pl.BlockSpec((data_dim, 1), lambda i: (0, 0)),            # bias (D,1)
            pl.BlockSpec((data_dim, batch_tile), lambda i: (0, i)),
        ]
        operands = (w.T, b.reshape(data_dim, 1), y_t)

    out_t = pl.pallas_call(
        kernel,
        out_shape=jax.ShapeDtypeStruct((data_dim, pad), y_t.dtype),
        grid=grid,
        in_specs=in_specs,
        out_specs=pl.BlockSpec((data_dim, batch_tile), lambda i: (0, i)),
        compiler_params=pltpu.CompilerParams(
            dimension_semantics=("parallel",),      # batch tiles independent (v7x megacore)
            vmem_limit_bytes=_vmem_limit_bytes(data_dim, batch_tile),
        ),
    )(*operands)
    return out_t[:, :batch] if pad != batch else out_t


@jax.jit
def odefunc_forward(t, y, folded_params):
    """Exact semantics of ODEFunc.forward(t, y): returns net(y); t is ignored.
    y: (batch, data_dim). folded_params = fold_odefunc_params(raw_params)."""
    del t
    w, b = folded_params
    return _affine_forward_t(y.T, w, b).T


@functools.partial(jax.jit, static_argnames=("num_steps", "dt"))
def odefunc_euler_steps(y0, folded_params, *, num_steps, dt):
    """Fused ODE stepping: `num_steps` explicit-Euler updates y <- y + dt*f(y)
    inside ONE pallas_call (W/b resident, no per-step launch/DMA overhead).
    y0: (batch, data_dim) -> final state (batch, data_dim)."""
    w, b = folded_params
    y_t = y0.T
    data_dim, batch = y_t.shape
    assert data_dim <= 8, "fused Euler path implemented for tiny data_dim"
    # TODO(synk): MXU variant of the fused step loop for data_dim >= 128.

    batch_tile = _pick_batch_tile(batch)
    y_t, pad = _pad_lanes(y_t, batch, batch_tile)
    grid = (pad // batch_tile,)

    kernel = functools.partial(_euler_vpu_kernel, data_dim=data_dim,
                               num_steps=num_steps, dt=dt)
    out_t = pl.pallas_call(
        kernel,
        out_shape=jax.ShapeDtypeStruct((data_dim, pad), y0.dtype),
        grid=grid,
        in_specs=[
            pl.BlockSpec(memory_space=pltpu.MemorySpace.SMEM),        # W
            pl.BlockSpec(memory_space=pltpu.MemorySpace.SMEM),        # b
            pl.BlockSpec((data_dim, batch_tile), lambda i: (0, i)),   # y0_T tile
        ],
        out_specs=pl.BlockSpec((data_dim, batch_tile), lambda i: (0, i)),
        compiler_params=pltpu.CompilerParams(
            dimension_semantics=("parallel",),
            vmem_limit_bytes=_vmem_limit_bytes(data_dim, batch_tile),
        ),
    )(w, b, y_t)
    out_t = out_t[:, :batch] if pad != batch else out_t
    return out_t.T


# ----------------------------------------------------------------------------
if __name__ == "__main__":
    key = jax.random.PRNGKey(0)
    kp, ky = jax.random.split(key)

    batch, data_dim, hidden_dim = 8, 4, 32
    raw_params = init_odefunc_params(kp, data_dim, hidden_dim)
    folded_params = fold_odefunc_params(raw_params)   # host-side, once
    y = jax.random.normal(ky, (batch, data_dim), jnp.float32)
    t = jnp.float32(0.0)  # unused, as in the PyTorch forward

    # 1) Single RHS evaluation (module forward semantics).
    out = jax.block_until_ready(odefunc_forward(t, y, folded_params))
    ref = odefunc_forward_ref(t, y, raw_params)
    assert out.shape == (batch, data_dim)
    assert jnp.allclose(out, ref, atol=1e-5, rtol=1e-5)

    # 2) Fused time-step loop (many RHS calls per pallas_call).
    num_steps, dt = 16, 0.05
    out_n = jax.block_until_ready(
        odefunc_euler_steps(y, folded_params, num_steps=num_steps, dt=dt))
    ref_n = y
    for _ in range(num_steps):
        ref_n = ref_n + dt * odefunc_forward_ref(t, ref_n, raw_params)
    assert out_n.shape == (batch, data_dim)
    assert jnp.allclose(out_n, ref_n, atol=1e-4, rtol=1e-4)

    print("KERNEL_OK")
</pallas_src>

<mosaic_0001>
module attributes {stable_mosaic.version = 11 : i64} {
  func.func @_affine_fwd_vpu_kernel(%arg0: i32, %arg1: memref<4x4xf32, #tpu.memory_space<smem>>, %arg2: memref<4xf32, #tpu.memory_space<smem>>, %arg3: memref<4x8xf32, #tpu.memory_space<vmem>>, %arg4: memref<4x8xf32, #tpu.memory_space<vmem>>) attributes {dimension_semantics = [#tpu.dimension_semantics<parallel>], iteration_bounds = array<i64: 1>, scalar_prefetch = 0 : i64, scratch_operands = 0 : i64, tpu.core_type = #tpu.core_type<tc>, window_params = [{transform_indices = @transform_0, window_bounds = array<i64: 4, 4>}, {transform_indices = @transform_1, window_bounds = array<i64: 4>}, {transform_indices = @transform_2, window_bounds = array<i64: 4, 8>}, {transform_indices = @transform_3, window_bounds = array<i64: 4, 8>}]} {
    %c0 = arith.constant 0 : index
    %c0_0 = arith.constant 0 : index
    %0 = vector.load %arg3[%c0, %c0_0] : memref<4x8xf32, #tpu.memory_space<vmem>>, vector<4x8xf32>
    %1 = vector.extract_strided_slice %0 {offsets = [0, 0], sizes = [1, 8], strides = [1, 1]} : vector<4x8xf32> to vector<1x8xf32>
    %c0_1 = arith.constant 0 : index
    %c0_2 = arith.constant 0 : index
    %2 = memref.load %arg1[%c0_1, %c0_2] : memref<4x4xf32, #tpu.memory_space<smem>>
    %3 = vector.broadcast %2 : f32 to vector<1x8xf32>
    %4 = arith.mulf %1, %3 : vector<1x8xf32>
    %5 = vector.extract_strided_slice %0 {offsets = [1, 0], sizes = [1, 8], strides = [1, 1]} : vector<4x8xf32> to vector<1x8xf32>
    %c1 = arith.constant 1 : index
    %c0_3 = arith.constant 0 : index
    %6 = memref.load %arg1[%c1, %c0_3] : memref<4x4xf32, #tpu.memory_space<smem>>
    %7 = vector.broadcast %6 : f32 to vector<1x8xf32>
    %8 = arith.mulf %5, %7 : vector<1x8xf32>
    %9 = arith.addf %4, %8 : vector<1x8xf32>
    %10 = vector.extract_strided_slice %0 {offsets = [2, 0], sizes = [1, 8], strides = [1, 1]} : vector<4x8xf32> to vector<1x8xf32>
    %c2 = arith.constant 2 : index
    %c0_4 = arith.constant 0 : index
    %11 = memref.load %arg1[%c2, %c0_4] : memref<4x4xf32, #tpu.memory_space<smem>>
    %12 = vector.broadcast %11 : f32 to vector<1x8xf32>
    %13 = arith.mulf %10, %12 : vector<1x8xf32>
    %14 = arith.addf %9, %13 : vector<1x8xf32>
    %15 = vector.extract_strided_slice %0 {offsets = [3, 0], sizes = [1, 8], strides = [1, 1]} : vector<4x8xf32> to vector<1x8xf32>
    %c3 = arith.constant 3 : index
    %c0_5 = arith.constant 0 : index
    %16 = memref.load %arg1[%c3, %c0_5] : memref<4x4xf32, #tpu.memory_space<smem>>
    %17 = vector.broadcast %16 : f32 to vector<1x8xf32>
    %18 = arith.mulf %15, %17 : vector<1x8xf32>
    %19 = arith.addf %14, %18 : vector<1x8xf32>
    %c0_6 = arith.constant 0 : index
    %20 = memref.load %arg2[%c0_6] : memref<4xf32, #tpu.memory_space<smem>>
    %21 = vector.broadcast %20 : f32 to vector<1x8xf32>
    %22 = arith.addf %19, %21 : vector<1x8xf32>
    %23 = vector.extract_strided_slice %0 {offsets = [0, 0], sizes = [1, 8], strides = [1, 1]} : vector<4x8xf32> to vector<1x8xf32>
    %c0_7 = arith.constant 0 : index
    %c1_8 = arith.constant 1 : index
    %24 = memref.load %arg1[%c0_7, %c1_8] : memref<4x4xf32, #tpu.memory_space<smem>>
    %25 = vector.broadcast %24 : f32 to vector<1x8xf32>
    %26 = arith.mulf %23, %25 : vector<1x8xf32>
    %27 = vector.extract_strided_slice %0 {offsets = [1, 0], sizes = [1, 8], strides = [1, 1]} : vector<4x8xf32> to vector<1x8xf32>
    %c1_9 = arith.constant 1 : index
    %c1_10 = arith.constant 1 : index
    %28 = memref.load %arg1[%c1_9, %c1_10] : memref<4x4xf32, #tpu.memory_space<smem>>
    %29 = vector.broadcast %28 : f32 to vector<1x8xf32>
    %30 = arith.mulf %27, %29 : vector<1x8xf32>
    %31 = arith.addf %26, %30 : vector<1x8xf32>
    %32 = vector.extract_strided_slice %0 {offsets = [2, 0], sizes = [1, 8], strides = [1, 1]} : vector<4x8xf32> to vector<1x8xf32>
    %c2_11 = arith.constant 2 : index
    %c1_12 = arith.constant 1 : index
    %33 = memref.load %arg1[%c2_11, %c1_12] : memref<4x4xf32, #tpu.memory_space<smem>>
    %34 = vector.broadcast %33 : f32 to vector<1x8xf32>
    %35 = arith.mulf %32, %34 : vector<1x8xf32>
    %36 = arith.addf %31, %35 : vector<1x8xf32>
    %37 = vector.extract_strided_slice %0 {offsets = [3, 0], sizes = [1, 8], strides = [1, 1]} : vector<4x8xf32> to vector<1x8xf32>
    %c3_13 = arith.constant 3 : index
    %c1_14 = arith.constant 1 : index
    %38 = memref.load %arg1[%c3_13, %c1_14] : memref<4x4xf32, #tpu.memory_space<smem>>
    %39 = vector.broadcast %38 : f32 to vector<1x8xf32>
    %40 = arith.mulf %37, %39 : vector<1x8xf32>
    %41 = arith.addf %36, %40 : vector<1x8xf32>
    %c1_15 = arith.constant 1 : index
    %42 = memref.load %arg2[%c1_15] : memref<4xf32, #tpu.memory_space<smem>>
    %43 = vector.broadcast %42 : f32 to vector<1x8xf32>
    %44 = arith.addf %41, %43 : vector<1x8xf32>
    %45 = vector.extract_strided_slice %0 {offsets = [0, 0], sizes = [1, 8], strides = [1, 1]} : vector<4x8xf32> to vector<1x8xf32>
    %c0_16 = arith.constant 0 : index
    %c2_17 = arith.constant 2 : index
    %46 = memref.load %arg1[%c0_16, %c2_17] : memref<4x4xf32, #tpu.memory_space<smem>>
    %47 = vector.broadcast %46 : f32 to vector<1x8xf32>
    %48 = arith.mulf %45, %47 : vector<1x8xf32>
    %49 = vector.extract_strided_slice %0 {offsets = [1, 0], sizes = [1, 8], strides = [1, 1]} : vector<4x8xf32> to vector<1x8xf32>
    %c1_18 = arith.constant 1 : index
    %c2_19 = arith.constant 2 : index
    %50 = memref.load %arg1[%c1_18, %c2_19] : memref<4x4xf32, #tpu.memory_space<smem>>
    %51 = vector.broadcast %50 : f32 to vector<1x8xf32>
    %52 = arith.mulf %49, %51 : vector<1x8xf32>
    %53 = arith.addf %48, %52 : vector<1x8xf32>
    %54 = vector.extract_strided_slice %0 {offsets = [2, 0], sizes = [1, 8], strides = [1, 1]} : vector<4x8xf32> to vector<1x8xf32>
    %c2_20 = arith.constant 2 : index
    %c2_21 = arith.constant 2 : index
    %55 = memref.load %arg1[%c2_20, %c2_21] : memref<4x4xf32, #tpu.memory_space<smem>>
    %56 = vector.broadcast %55 : f32 to vector<1x8xf32>
    %57 = arith.mulf %54, %56 : vector<1x8xf32>
    %58 = arith.addf %53, %57 : vector<1x8xf32>
    %59 = vector.extract_strided_slice %0 {offsets = [3, 0], sizes = [1, 8], strides = [1, 1]} : vector<4x8xf32> to vector<1x8xf32>
    %c3_22 = arith.constant 3 : index
    %c2_23 = arith.constant 2 : index
    %60 = memref.load %arg1[%c3_22, %c2_23] : memref<4x4xf32, #tpu.memory_space<smem>>
    %61 = vector.broadcast %60 : f32 to vector<1x8xf32>
    %62 = arith.mulf %59, %61 : vector<1x8xf32>
    %63 = arith.addf %58, %62 : vector<1x8xf32>
    %c2_24 = arith.constant 2 : index
    %64 = memref.load %arg2[%c2_24] : memref<4xf32, #tpu.memory_space<smem>>
    %65 = vector.broadcast %64 : f32 to vector<1x8xf32>
    %66 = arith.addf %63, %65 : vector<1x8xf32>
    %67 = vector.extract_strided_slice %0 {offsets = [0, 0], sizes = [1, 8], strides = [1, 1]} : vector<4x8xf32> to vector<1x8xf32>
    %c0_25 = arith.constant 0 : index
    %c3_26 = arith.constant 3 : index
    %68 = memref.load %arg1[%c0_25, %c3_26] : memref<4x4xf32, #tpu.memory_space<smem>>
    %69 = vector.broadcast %68 : f32 to vector<1x8xf32>
    %70 = arith.mulf %67, %69 : vector<1x8xf32>
    %71 = vector.extract_strided_slice %0 {offsets = [1, 0], sizes = [1, 8], strides = [1, 1]} : vector<4x8xf32> to vector<1x8xf32>
    %c1_27 = arith.constant 1 : index
    %c3_28 = arith.constant 3 : index
    %72 = memref.load %arg1[%c1_27, %c3_28] : memref<4x4xf32, #tpu.memory_space<smem>>
    %73 = vector.broadcast %72 : f32 to vector<1x8xf32>
    %74 = arith.mulf %71, %73 : vector<1x8xf32>
    %75 = arith.addf %70, %74 : vector<1x8xf32>
    %76 = vector.extract_strided_slice %0 {offsets = [2, 0], sizes = [1, 8], strides = [1, 1]} : vector<4x8xf32> to vector<1x8xf32>
    %c2_29 = arith.constant 2 : index
    %c3_30 = arith.constant 3 : index
    %77 = memref.load %arg1[%c2_29, %c3_30] : memref<4x4xf32, #tpu.memory_space<smem>>
    %78 = vector.broadcast %77 : f32 to vector<1x8xf32>
    %79 = arith.mulf %76, %78 : vector<1x8xf32>
    %80 = arith.addf %75, %79 : vector<1x8xf32>
    %81 = vector.extract_strided_slice %0 {offsets = [3, 0], sizes = [1, 8], strides = [1, 1]} : vector<4x8xf32> to vector<1x8xf32>
    %c3_31 = arith.constant 3 : index
    %c3_32 = arith.constant 3 : index
    %82 = memref.load %arg1[%c3_31, %c3_32] : memref<4x4xf32, #tpu.memory_space<smem>>
    %83 = vector.broadcast %82 : f32 to vector<1x8xf32>
    %84 = arith.mulf %81, %83 : vector<1x8xf32>
    %85 = arith.addf %80, %84 : vector<1x8xf32>
    %c3_33 = arith.constant 3 : index
    %86 = memref.load %arg2[%c3_33] : memref<4xf32, #tpu.memory_space<smem>>
    %87 = vector.broadcast %86 : f32 to vector<1x8xf32>
    %88 = arith.addf %85, %87 : vector<1x8xf32>
    %89 = tpu.concatenate %22, %44, %66, %88 in 0 : vector<1x8xf32>, vector<1x8xf32>, vector<1x8xf32>, vector<1x8xf32> -> vector<4x8xf32>
    %c0_34 = arith.constant 0 : index
    %c0_35 = arith.constant 0 : index
    %90 = vector.load %arg4[%c0_34, %c0_35] : memref<4x8xf32, #tpu.memory_space<vmem>>, vector<4x8xf32>
    tpu.vector_store %arg4[%c0_34, %c0_35], %89 {strides = array<i32>} : memref<4x8xf32, #tpu.memory_space<vmem>>, vector<4x8xf32>,
    return
  }
  func.func @transform_0(%arg0: i32) -> (i32, i32) {
    %c0_i32 = arith.constant 0 : i32
    %c0_i32_0 = arith.constant 0 : i32
    %c0_i32_1 = arith.constant 0 : i32
    return %c0_i32, %c0_i32_0 : i32, i32
  }
  func.func @transform_1(%arg0: i32) -> i32 {
    %c0_i32 = arith.constant 0 : i32
    %c0_i32_0 = arith.constant 0 : i32
    return %c0_i32 : i32
  }
  func.func @transform_2(%arg0: i32) -> (i32, i32) {
    %c0_i32 = arith.constant 0 : i32
    %c0_i32_0 = arith.constant 0 : i32
    return %c0_i32, %arg0 : i32, i32
  }
  func.func @transform_3(%arg0: i32) -> (i32, i32) {
    %c0_i32 = arith.constant 0 : i32
    %c0_i32_0 = arith.constant 0 : i32
    return %c0_i32, %arg0 : i32, i32
  }
}

</mosaic_0001>

<llo_original>
// kernel: odefunc_forward.1
$region0: #{odefunc_forward.1}
  #allocation0 [shape = 'u32[]', space=smem, size = 0x4, offset = 0x4, fixed_abs, tag = 'smem constant byte address 0x4 - core index']
  #allocation1 [shape = 'u32[144,128]{1,0:T(1,128)}', space=vmem, size = 0x12000, scoped, tag = 'internal scratch']
  %s0 = inlined_call_operand.vmem [shape: f32[4,4], index: 0, kind: input, shape index: {}]
  %s1 = inlined_call_operand.vmem [shape: f32[4], index: 1, kind: input, shape index: {}]
  %s2 = inlined_call_operand.hbm [shape: f32[4,8], index: 2, kind: input, shape index: {}]
  %s3 = inlined_call_operand.hbm [shape: f32[4,8], index: 3, kind: output, shape index: {}]
  %s4 = sld [smem:[#allocation0]]
  $region34: #{odefunc_forward.1} parent=0
    _
  %s6 = ssub.s32 1, %s4
  %s7 = scalar_select 0, %s6, %s4
  $region1: #{odefunc_forward.1} parent=0
    #allocation2 [shape = 'u8[2048]{0}', space=smem, size = 0x800, scoped, tag = 'input window, operand 0, single buffered']
    #allocation3 [shape = 's32[1]{0}', space=sflag, size = 0x4, scoped, tag = 'scoped memory for odefunc_forward.1']
    #allocation4 [shape = 's32[1]{0}', space=sflag, size = 0x4, scoped, tag = 'scoped memory for odefunc_forward.1']
    #allocation5 [shape = 's32[1]{0}', space=sflag, size = 0x4, scoped, tag = 'scoped memory for odefunc_forward.1']
    #allocation6 [shape = 'u8[512]{0}', space=smem, size = 0x200, scoped, tag = 'input window, operand 1, single buffered']
    #allocation7 [shape = 's32[1]{0}', space=sflag, size = 0x4, scoped, tag = 'scoped memory for odefunc_forward.1']
    #allocation8 [shape = 'u8[2048]{0}', space=vmem, size = 0x800, scoped, tag = 'input window, operand 2, single buffered']
    #allocation9 [shape = 'u8[2048]{0}', space=vmem, size = 0x800, scoped, tag = 'output window, operand 0, single buffered']
    %8 = vsyncpa [#allocation5], 0
    %9 = vsyncpa [#allocation7], 0
    %10 = vsyncpa [#allocation3], 0
    %11 = vsyncpa [#allocation4], 0
    // Predicated region
    $region2: #{odefunc_forward.1} parent=1 // pred_check
      _
    $region3: #{odefunc_forward.1} parent=1 // pred_check_branch
      %13 = sbr.rel (0) target = $region5
    $region4: #{odefunc_forward.1} parent=1 // pred_region
      %s15 = ssub.s32 64, 64
      %16 = vsyncadd [#allocation5], %s15
      %s18 = sshll.u32 %s0, 4
      %s19 = int_to_ptr.vmem [resolvable:$true] %s18
      %21 = dma.vmem_to_smem %s19, 64, [#allocation2], [#allocation5]
    $region5: #{odefunc_forward.1} parent=1 // pred_fallthru
      _
    // Predicated region
    $region6: #{odefunc_forward.1} parent=1 // pred_check
      _
    $region7: #{odefunc_forward.1} parent=1 // pred_check_branch
      %23 = sbr.rel (0) target = $region9
    $region8: #{odefunc_forward.1} parent=1 // pred_region
      %s25 = ssub.s32 16, 16
      %26 = vsyncadd [#allocation7], %s25
      %s28 = sshll.u32 %s1, 4
      %s29 = int_to_ptr.vmem [resolvable:$true] %s28
      %31 = dma.vmem_to_smem %s29, 16, [#allocation6], [#allocation7]
    $region9: #{odefunc_forward.1} parent=1 // pred_fallthru
      _
    // Predicated region
    $region10: #{odefunc_forward.1} parent=1 // pred_check
      _
    $region11: #{odefunc_forward.1} parent=1 // pred_check_branch
      %33 = sbr.rel (0) target = $region13
    $region12: #{odefunc_forward.1} parent=1 // pred_region
      %s35 = ssub.s32 64, 64
      %36 = vsyncadd [#allocation3], %s35
      %s38 = sshll.u32 [#allocation8], 4
      %s39 = int_to_ptr.vmem [resolvable:$true] %s38
      %41 = dma.hbm_to_vmem [thread:$0]  %s2, 64, %s39, [#allocation3]
    $region13: #{odefunc_forward.1} parent=1 // pred_fallthru
      _
    // Predicated region
    $region14: #{odefunc_forward.1} parent=1 // pred_check
      _
    $region15: #{odefunc_forward.1} parent=1 // pred_check_branch
      %43 = sbr.rel (0) target = $region17
    $region16: #{odefunc_forward.1} parent=1 // pred_region
      %44 = dma.done [#allocation5], 64
    $region17: #{odefunc_forward.1} parent=1 // pred_fallthru
      _
    // Predicated region
    $region18: #{odefunc_forward.1} parent=1 // pred_check
      _
    $region19: #{odefunc_forward.1} parent=1 // pred_check_branch
      %46 = sbr.rel (0) target = $region21
    $region20: #{odefunc_forward.1} parent=1 // pred_region
      %47 = dma.done [#allocation7], 16
    $region21: #{odefunc_forward.1} parent=1 // pred_fallthru
      _
    // Predicated region
    $region22: #{odefunc_forward.1} parent=1 // pred_check
      _
    $region23: #{odefunc_forward.1} parent=1 // pred_check_branch
      %49 = sbr.rel (0) target = $region25
    $region24: #{odefunc_forward.1} parent=1 // pred_region
      %50 = dma.done [#allocation3], 64
    $region25: #{odefunc_forward.1} parent=1 // pred_fallthru
      _
    %51 = sfence
    %v52 = vld [vmem:[#allocation8] sm:$0xf]
    %s53 = sld [smem:[#allocation2]]
    %v54 = vstv %s53
    %v55 = vmul.f32 %v52, %v54
    %s56 = sld [smem:[#allocation2 + $0x80]]
    %v57 = vstv %s56
    %v58 = vmul.f32 %v52, %v57
    %v60 = vrot.slane %v58, 1
    %v62 = vadd.f32 %v55, %v60
    %s63 = sld [smem:[#allocation2 + $0x100]]
    %v64 = vstv %s63
    %v65 = vmul.f32 %v52, %v64
    %v67 = vrot.slane %v65, 2
    %v69 = vadd.f32 %v62, %v67
    %s70 = sld [smem:[#allocation2 + $0x180]]
    %v71 = vstv %s70
    %v72 = vmul.f32 %v52, %v71
    %v74 = vrot.slane %v72, 3
    %v76 = vadd.f32 %v69, %v74
    %s77 = sld [smem:[#allocation6]]
    %v78 = vstv %s77
    %v79 = vadd.f32 %v76, %v78
    %s80 = sld [smem:[#allocation2 + $0x1]]
    %v81 = vstv %s80
    %v82 = vmul.f32 %v52, %v81
    %s83 = sld [smem:[#allocation2 + $0x81]]
    %v84 = vstv %s83
    %v85 = vmul.f32 %v52, %v84
    %v87 = vrot.slane %v85, 1
    %v89 = vadd.f32 %v82, %v87
    %s90 = sld [smem:[#allocation2 + $0x101]]
    %v91 = vstv %s90
    %v92 = vmul.f32 %v52, %v91
    %v94 = vrot.slane %v92, 2
    %v96 = vadd.f32 %v89, %v94
    %s97 = sld [smem:[#allocation2 + $0x181]]
    %v98 = vstv %s97
    %v99 = vmul.f32 %v52, %v98
    %v101 = vrot.slane %v99, 3
    %v103 = vadd.f32 %v96, %v101
    %s104 = sld [smem:[#allocation6 + $0x1]]
    %v105 = vstv %s104
    %v106 = vadd.f32 %v103, %v105
    %s107 = sld [smem:[#allocation2 + $0x2]]
    %v108 = vstv %s107
    %v109 = vmul.f32 %v52, %v108
    %s110 = sld [smem:[#allocation2 + $0x82]]
    %v111 = vstv %s110
    %v112 = vmul.f32 %v52, %v111
    %v114 = vrot.slane %v112, 1
    %v116 = vadd.f32 %v109, %v114
    %s117 = sld [smem:[#allocation2 + $0x102]]
    %v118 = vstv %s117
    %v119 = vmul.f32 %v52, %v118
    %v121 = vrot.slane %v119, 2
    %v123 = vadd.f32 %v116, %v121
    %s124 = sld [smem:[#allocation2 + $0x182]]
    %v125 = vstv %s124
    %v126 = vmul.f32 %v52, %v125
    %v128 = vrot.slane %v126, 3
    %v130 = vadd.f32 %v123, %v128
    %s131 = sld [smem:[#allocation6 + $0x2]]
    %v132 = vstv %s131
    %v133 = vadd.f32 %v130, %v132
    %s134 = sld [smem:[#allocation2 + $0x3]]
    %v135 = vstv %s134
    %v136 = vmul.f32 %v52, %v135
    %s137 = sld [smem:[#allocation2 + $0x83]]
    %v138 = vstv %s137
    %v139 = vmul.f32 %v52, %v138
    %v141 = vrot.slane %v139, 1
    %v143 = vadd.f32 %v136, %v141
    %s144 = sld [smem:[#allocation2 + $0x103]]
    %v145 = vstv %s144
    %v146 = vmul.f32 %v52, %v145
    %v148 = vrot.slane %v146, 2
    %v150 = vadd.f32 %v143, %v148
    %s151 = sld [smem:[#allocation2 + $0x183]]
    %v152 = vstv %s151
    %v153 = vmul.f32 %v52, %v152
    %v155 = vrot.slane %v153, 3
    %v157 = vadd.f32 %v150, %v155
    %s158 = sld [smem:[#allocation6 + $0x3]]
    %v159 = vstv %s158
    %v160 = vadd.f32 %v157, %v159
    %v162 = vrot.slane %v106, 7
    %v165 = vrot.slane %v133, 6
    %v168 = vrot.slane %v160, 5
    %vm170 = vcmask 1040384
    %v171 = vsel %vm170, %v79, %v162
    %vm172 = vcmask 1041408
    %v173 = vsel %vm172, %v171, %v165
    %vm174 = vcmask 1042432
    %v175 = vsel %vm174, %v173, %v168
    %vm176 = vcmask 60416
    %177 = vst.msk [vmem:[#allocation9] sm:$0xf] %vm176, %v175
    // Predicated region
    $region26: #{odefunc_forward.1} parent=1 // pred_check
      _
    $region27: #{odefunc_forward.1} parent=1 // pred_check_branch
      %179 = sbr.rel (0) target = $region29
    $region28: #{odefunc_forward.1} parent=1 // pred_region
      %s181 = ssub.s32 64, 64
      %182 = vsyncadd [#allocation4], %s181
      %s184 = sshll.u32 [#allocation9], 4
      %s185 = int_to_ptr.vmem [resolvable:$true] %s184
      %187 = dma.vmem_to_hbm [thread:$0]  %s185, 64, %s3, [#allocation4]
    $region29: #{odefunc_forward.1} parent=1 // pred_fallthru
      _
    // Predicated region
    $region30: #{odefunc_forward.1} parent=1 // pred_check
      _
    $region31: #{odefunc_forward.1} parent=1 // pred_check_branch
      %189 = sbr.rel (0) target = $region33
    $region32: #{odefunc_forward.1} parent=1 // pred_region
      %190 = dma.done [#allocation4], 64
    $region33: #{odefunc_forward.1} parent=1 // pred_fallthru
      _
    %191 = vsyncpa [#allocation3], 1
    %192 = vsyncpa [#allocation4], 1
    %193 = vsyncpa [#allocation5], 1
    %194 = vsyncpa [#allocation7], 1

</llo_original>
